<compile_context>
chip_gen: v5e
topology: v5e:2x2
jax: 0.10.0
libtpu: 0.0.40
codegen_flags: <defaults>
</compile_context>

<pallas_src>
import functools

import jax
import jax.numpy as jnp
from jax.experimental import pallas as pl
from jax.experimental.pallas import tpu as pltpu


# ---------------------------------------------------------------------------
# Fused kernel: RGCN (message passing + MLP head) + Gaussianize epilogue
# ---------------------------------------------------------------------------
def _gaussianize_fused_kernel(cond_ref, x_ref, a_blk_ref, wt_ref, bias_ref,
                              out_ref, ld_ref, msg_ref,
                              *, B, N, E, L, H, Dc, Dh):
    """Single invocation (no grid): the whole (tiny) batch at once.

    cond_ref : (B*N, Dc)  f32   conditioning node features (RGCN input)
    x_ref    : (B*N, Dh)  f32   features to gaussianize
    a_blk_ref: (B*N, E*B*N) bf16  block-diag (over batch) adjacency, edge-concat
    wt_ref   : ((L*E + L + 2)*H, H) bf16  packed weights:
                 rows [(l*E+e)*H : ...+H]        = We[l, e]
                 rows [L*E*H + l*H : ...+H]      = Ws[l]   (self loop)
                 rows [off_w1 : off_w1+H]        = w1
                 rows [off_w2 : off_w2+H]        = w2 (lane-padded to H)
    bias_ref : (L+2, H)   f32   rows 0..L-1 = bg[l], row L = b1, row L+1 = b2
    out_ref  : (B*N, Dh)  f32   (x - mean) * std
    ld_ref   : (B,) SMEM  f32   logdet = sum log(std) per batch element
    msg_ref  : (E*B*N, H) bf16  VMEM scratch: per-edge messages, sublane-stacked
    """
    BN = B * N
    off_ws = L * E * H
    off_w1 = off_ws + L * H
    off_w2 = off_w1 + H

    a_blk = a_blk_ref[...]                       # (BN, E*BN) bf16, 1 vreg, reused

    # ---- RGCN layers --------------------------------------------------------
    h = cond_ref[...]                            # (BN, Dc) f32
    din = Dc
    for l in range(L):                           # static unroll (L tiny)
        hb = h.astype(jnp.bfloat16)
        # Self-loop feature transform. Layer 0 uses only the first `din`
        # weight rows (mathematically identical to zero-padding cond).
        w_self = wt_ref[pl.ds(off_ws + l * H, din), :]
        agg = jnp.dot(hb, w_self, preferred_element_type=jnp.float32)   # (BN, H) f32
        # Per-edge messages, written into the scratch at sublane offset e*BN
        # (multiple of 16 -> bf16 tile aligned, no lane slicing anywhere).
        for e in range(E):                       # static unroll, E tiny
            w_e = wt_ref[pl.ds((l * E + e) * H, din), :]
            msg_ref[pl.ds(e * BN, BN), :] = jnp.dot(
                hb, w_e, preferred_element_type=jnp.float32
            ).astype(jnp.bfloat16)
        # All edge types + all batch elements aggregated in ONE matmul.
        agg = agg + jnp.dot(a_blk, msg_ref[...],
                            preferred_element_type=jnp.float32)
        h = jax.nn.relu(agg + bias_ref[pl.ds(l, 1), :])                 # (BN, H) f32
        din = H

    # ---- MLP head -----------------------------------------------------------
    y = jax.nn.relu(
        jnp.dot(h.astype(jnp.bfloat16), wt_ref[pl.ds(off_w1, H), :],
                preferred_element_type=jnp.float32)
        + bias_ref[pl.ds(L, 1), :])
    net = (jnp.dot(y.astype(jnp.bfloat16), wt_ref[pl.ds(off_w2, H), :],
                   preferred_element_type=jnp.float32)
           + bias_ref[pl.ds(L + 1, 1), :])        # (BN, H); cols >= 2*Dh are zero pad

    # ---- Gaussianize epilogue (all f32; fused, no extra HBM round-trip) -----
    log_std_raw = net[:, :Dh]                     # chunk(2, dim=2): first half
    mean = net[:, Dh:2 * Dh]                      # second half
    log_std = log_std_raw * jax.nn.sigmoid(log_std_raw)   # SiLU
    # std = 1 / sigmoid(log_std) == 1 + exp(-log_std) (exact identity).
    # SiLU bounds log_std below (~-0.2785) so std in (1, ~2.32], log(std) stable.
    std = 1.0 + jnp.exp(-log_std)
    out_ref[...] = (x_ref[...] - mean) * std

    # logdet: one lane reduce, then B tiny sublane reduces -> SMEM scalars.
    row_sums = jnp.sum(jnp.log(std), axis=-1, keepdims=True)   # (BN, 1)
    for b in range(B):                            # static unroll
        ld_ref[b] = jnp.sum(row_sums[b * N:(b + 1) * N, :])
    # TODO(synk): the reference's runtime `if std.sum() != std.sum(): print('nan')`
    # debug print has no clean in-kernel equivalent and is omitted.


# ---------------------------------------------------------------------------
# Wrapper
# ---------------------------------------------------------------------------
def gaussianize_forward(params, x, cond, adj):
    """Pallas forward of Gaussianize: returns (out, logdet)."""
    B, N, Dh = x.shape
    Dc = cond.shape[-1]
    E = adj.shape[1]
    we, ws = params["we"], params["ws"]
    L, _, H, _ = we.shape
    Do = params["w2"].shape[-1]
    assert Do == 2 * Dh and Dc <= H
    BN = B * N

    # ---- pack small parameter tensors into 2 operands (fewer input DMAs) ----
    w2p = jnp.zeros((H, H), jnp.float32).at[:, :Do].set(params["w2"])
    wt = jnp.concatenate(
        [we.reshape(L * E * H, H), ws.reshape(L * H, H), params["w1"], w2p],
        axis=0).astype(jnp.bfloat16)                     # ((L*E + L + 2)*H, H)
    b2p = jnp.zeros((1, H), jnp.float32).at[:, :Do].set(params["b2"])
    bias = jnp.concatenate(
        [params["bg"].reshape(L, H), params["b1"], b2p], axis=0)   # (L+2, H) f32

    # ---- block-diagonal (over batch) adjacency, concatenated over edge types
    # a_blk[b*N+n, e*B*N + c*N + m] = (b == c) * adj[b, e, n, m]
    # TODO(synk): a_blk is (B*N, E*B*N); for large B reintroduce a "parallel"
    # batch grid axis (also keeps per-batch adj inside v7x's 64 MiB VMEM).
    a_blk = jnp.einsum('bc,benm->bnecm', jnp.eye(B, dtype=adj.dtype), adj)
    a_blk = a_blk.reshape(BN, E * BN).astype(jnp.bfloat16)

    cond2 = cond.reshape(BN, Dc)
    x2 = x.reshape(BN, Dh)

    # ---- advisory cost estimate ---------------------------------------------
    flops = 0
    din = Dc
    for _l in range(L):
        flops += 2 * BN * din * H * (E + 1)              # feature matmuls
        flops += 2 * BN * (E * BN) * H                   # block-diag aggregation
        din = H
    flops += 2 * BN * H * H * 2                          # MLP head (w2 lane-padded)
    bytes_accessed = sum(int(a.size) * a.dtype.itemsize
                         for a in (cond2, x2, a_blk, wt, bias))
    bytes_accessed += BN * Dh * 4 + B * 4                # outputs
    cost = pl.CostEstimate(flops=int(flops),
                           transcendentals=int(3 * BN * Dh),
                           bytes_accessed=int(bytes_accessed))

    vmem = pl.BlockSpec(memory_space=pltpu.MemorySpace.VMEM)
    smem = pl.BlockSpec(memory_space=pltpu.MemorySpace.SMEM)

    kernel = functools.partial(_gaussianize_fused_kernel,
                               B=B, N=N, E=E, L=L, H=H, Dc=Dc, Dh=Dh)

    # Single fused gridless invocation: at these sizes the kernel is
    # launch/DMA-latency bound, so no batch grid. Everything resident in VMEM.
    out2, logdet = pl.pallas_call(
        kernel,
        out_shape=(jax.ShapeDtypeStruct((BN, Dh), jnp.float32),
                   jax.ShapeDtypeStruct((B,), jnp.float32)),
        in_specs=[vmem] * 5,
        out_specs=(vmem, smem),
        scratch_shapes=[pltpu.VMEM((E * BN, H), jnp.bfloat16)],
        compiler_params=pltpu.CompilerParams(vmem_limit_bytes=32 * 1024 * 1024),
        cost_estimate=cost,
    )(cond2, x2, a_blk, wt, bias)
    return out2.reshape(B, N, Dh), logdet


# ---------------------------------------------------------------------------
# Parameter construction (deterministic) + pure-JAX reference
# ---------------------------------------------------------------------------
def init_gaussianize(key, num_layers, n_edge, in_dim, hid_dim):
    """Parameters for Gaussianize(num_layers, n_node, in_dim, hid_dim).

    RGCN realised as:  h <- relu(h @ Ws + sum_e A_e @ (h @ We) + b)  per layer,
    then relu-linear1 + linear2 head; linear2 is zero-initialised exactly as
    Gaussianize.__init__ requires.  RGCN out_dim == in_dim (chunked into
    log_std / mean of width in_dim // 2 each).
    """
    k1, k2, k3 = jax.random.split(key, 3)
    L, E, H, Do = num_layers, n_edge, hid_dim, in_dim
    return dict(
        we=0.1 * jax.random.normal(k1, (L, E, H, H), jnp.float32),
        ws=0.1 * jax.random.normal(k2, (L, H, H), jnp.float32),
        bg=jnp.zeros((L, 1, H), jnp.float32),
        w1=0.1 * jax.random.normal(k3, (H, H), jnp.float32),
        b1=jnp.zeros((1, H), jnp.float32),
        w2=jnp.zeros((H, Do), jnp.float32),              # linear2 zero-init (spec)
        b2=jnp.zeros((1, Do), jnp.float32),
    )


def gaussianize_reference(params, x, cond, adj):
    """Plain-JAX reference mirroring the PyTorch forward (naive per-edge form)."""
    we, ws, bg = params["we"], params["ws"], params["bg"]
    w1, b1, w2, b2 = params["w1"], params["b1"], params["w2"], params["b2"]
    L, E = we.shape[0], we.shape[1]
    h = cond
    for l in range(L):
        din = h.shape[-1]
        agg = jnp.einsum('bnk,kh->bnh', h, ws[l, :din])
        for e in range(E):
            msg = jnp.einsum('bnk,kh->bnh', h, we[l, e, :din])
            agg = agg + jnp.einsum('bnm,bmh->bnh', adj[:, e], msg)
        h = jax.nn.relu(agg + bg[l])
    y = jax.nn.relu(jnp.einsum('bnk,kh->bnh', h, w1) + b1)
    net = jnp.einsum('bnk,kh->bnh', y, w2) + b2
    Dh = x.shape[-1]
    log_std, mean = net[..., :Dh], net[..., Dh:]
    log_std = jax.nn.silu(log_std)
    std = 1.0 / jax.nn.sigmoid(log_std)
    out = (x - mean) * std
    logdet = jnp.sum(jnp.log(std).reshape(x.shape[0], -1), axis=1)
    return out, logdet


# ---------------------------------------------------------------------------
if __name__ == "__main__":
    key = jax.random.PRNGKey(0)
    k_param, k_x, k_cond, k_adj, k_w2 = jax.random.split(key, 5)

    # Gaussianize(num_layers=2, n_node=8, in_dim=4, hid_dim=32), 2 edge types.
    B, E = 2, 2
    num_layers, n_node, in_dim, hid_dim = 2, 8, 4, 32
    Dh = in_dim // 2          # net output (width in_dim) chunks into (log_std, mean)

    x = jax.random.normal(k_x, (B, n_node, Dh), jnp.float32)
    cond = jax.random.normal(k_cond, (B, n_node, in_dim), jnp.float32)
    adj = jax.random.uniform(k_adj, (B, E, n_node, n_node), jnp.float32)

    params = init_gaussianize(k_param, num_layers, E, in_dim, hid_dim)
    fwd = jax.jit(gaussianize_forward)

    # 1) Spec-faithful init (linear2 zero-init => net output is exactly zero).
    out, logdet = fwd(params, x, cond, adj)
    jax.block_until_ready((out, logdet))
    out_r, ld_r = gaussianize_reference(params, x, cond, adj)
    assert jnp.allclose(out, out_r, rtol=3e-2, atol=3e-2)
    assert jnp.allclose(logdet, ld_r, rtol=3e-2, atol=3e-2)

    # 2) Numerics check with a non-zero head so the full RGCN path is exercised
    #    (weights "as if trained"; not part of the module's __init__).
    #    Tolerance absorbs the bf16 MXU operands (accumulation stays f32).
    params2 = dict(params)
    params2["w2"] = 0.1 * jax.random.normal(k_w2, params["w2"].shape, jnp.float32)
    out2, ld2 = fwd(params2, x, cond, adj)
    jax.block_until_ready((out2, ld2))
    out2_r, ld2_r = gaussianize_reference(params2, x, cond, adj)
    assert jnp.allclose(out2, out2_r, rtol=3e-2, atol=3e-2)
    assert jnp.allclose(ld2, ld2_r, rtol=3e-2, atol=3e-2)

    print("KERNEL_OK")
</pallas_src>

<mosaic_0001>
module attributes {stable_mosaic.version = 11 : i64} {
  func.func @_gaussianize_fused_kernel(%arg0: memref<16x4xf32, #tpu.memory_space<vmem>>, %arg1: memref<16x2xf32, #tpu.memory_space<vmem>>, %arg2: memref<16x32xbf16, #tpu.memory_space<vmem>>, %arg3: memref<256x32xbf16, #tpu.memory_space<vmem>>, %arg4: memref<4x32xf32, #tpu.memory_space<vmem>>, %arg5: memref<16x2xf32, #tpu.memory_space<vmem>>, %arg6: memref<2xf32, #tpu.memory_space<smem>>, %arg7: memref<32x32xbf16, #tpu.memory_space<vmem>>) attributes {dimension_semantics = [], scalar_prefetch = 0 : i64, scratch_operands = 1 : i64, tpu.core_type = #tpu.core_type<tc>} {
    %c0 = arith.constant 0 : index
    %c0_0 = arith.constant 0 : index
    %0 = vector.load %arg2[%c0, %c0_0] : memref<16x32xbf16, #tpu.memory_space<vmem>>, vector<16x32xbf16>
    %c0_1 = arith.constant 0 : index
    %c0_2 = arith.constant 0 : index
    %1 = vector.load %arg0[%c0_1, %c0_2] : memref<16x4xf32, #tpu.memory_space<vmem>>, vector<16x4xf32>
    %2 = arith.truncf %1 : vector<16x4xf32> to vector<16x4xbf16>
    %c128 = arith.constant 128 : index
    %c0_3 = arith.constant 0 : index
    %3 = vector.load %arg3[%c128, %c0_3] : memref<256x32xbf16, #tpu.memory_space<vmem>>, vector<4x32xbf16>
    %cst = arith.constant dense<0.000000e+00> : vector<16x32xf32>
    %4 = tpu.matmul %2, %3, %cst {dimension_numbers = #tpu.dot_dimension_numbers<[1], [0], [0], [1], [0, 0, 1, 1], [], []>} : vector<16x4xbf16>, vector<4x32xbf16>, vector<16x32xf32> -> vector<16x32xf32>
    %c0_4 = arith.constant 0 : index
    %c0_5 = arith.constant 0 : index
    %5 = vector.load %arg3[%c0_4, %c0_5] : memref<256x32xbf16, #tpu.memory_space<vmem>>, vector<4x32xbf16>
    %cst_6 = arith.constant dense<0.000000e+00> : vector<16x32xf32>
    %6 = tpu.matmul %2, %5, %cst_6 {dimension_numbers = #tpu.dot_dimension_numbers<[1], [0], [0], [1], [0, 0, 1, 1], [], []>} : vector<16x4xbf16>, vector<4x32xbf16>, vector<16x32xf32> -> vector<16x32xf32>
    %7 = arith.truncf %6 : vector<16x32xf32> to vector<16x32xbf16>
    %c0_7 = arith.constant 0 : index
    %c0_8 = arith.constant 0 : index
    %8 = vector.load %arg7[%c0_7, %c0_8] : memref<32x32xbf16, #tpu.memory_space<vmem>>, vector<16x32xbf16>
    tpu.vector_store %arg7[%c0_7, %c0_8], %7 {strides = array<i32>} : memref<32x32xbf16, #tpu.memory_space<vmem>>, vector<16x32xbf16>,
    %c32 = arith.constant 32 : index
    %c0_9 = arith.constant 0 : index
    %9 = vector.load %arg3[%c32, %c0_9] : memref<256x32xbf16, #tpu.memory_space<vmem>>, vector<4x32xbf16>
    %cst_10 = arith.constant dense<0.000000e+00> : vector<16x32xf32>
    %10 = tpu.matmul %2, %9, %cst_10 {dimension_numbers = #tpu.dot_dimension_numbers<[1], [0], [0], [1], [0, 0, 1, 1], [], []>} : vector<16x4xbf16>, vector<4x32xbf16>, vector<16x32xf32> -> vector<16x32xf32>
    %11 = arith.truncf %10 : vector<16x32xf32> to vector<16x32xbf16>
    %c16 = arith.constant 16 : index
    %c0_11 = arith.constant 0 : index
    %12 = vector.load %arg7[%c16, %c0_11] : memref<32x32xbf16, #tpu.memory_space<vmem>>, vector<16x32xbf16>
    tpu.vector_store %arg7[%c16, %c0_11], %11 {strides = array<i32>} : memref<32x32xbf16, #tpu.memory_space<vmem>>, vector<16x32xbf16>,
    %c0_12 = arith.constant 0 : index
    %c0_13 = arith.constant 0 : index
    %13 = vector.load %arg7[%c0_12, %c0_13] : memref<32x32xbf16, #tpu.memory_space<vmem>>, vector<32x32xbf16>
    %cst_14 = arith.constant dense<0.000000e+00> : vector<16x32xf32>
    %14 = tpu.matmul %0, %13, %cst_14 {dimension_numbers = #tpu.dot_dimension_numbers<[1], [0], [0], [1], [0, 0, 1, 1], [], []>} : vector<16x32xbf16>, vector<32x32xbf16>, vector<16x32xf32> -> vector<16x32xf32>
    %15 = arith.addf %4, %14 : vector<16x32xf32>
    %c0_15 = arith.constant 0 : index
    %c0_16 = arith.constant 0 : index
    %16 = vector.load %arg4[%c0_15, %c0_16] : memref<4x32xf32, #tpu.memory_space<vmem>>, vector<1x32xf32>
    %17 = vector.broadcast %16 : vector<1x32xf32> to vector<16x32xf32>
    %18 = arith.addf %15, %17 : vector<16x32xf32>
    %cst_17 = arith.constant 0.000000e+00 : f32
    %19 = vector.broadcast %cst_17 : f32 to vector<16x32xf32>
    %20 = arith.maximumf %18, %19 : vector<16x32xf32>
    %21 = arith.truncf %20 : vector<16x32xf32> to vector<16x32xbf16>
    %c160 = arith.constant 160 : index
    %c0_18 = arith.constant 0 : index
    %22 = vector.load %arg3[%c160, %c0_18] : memref<256x32xbf16, #tpu.memory_space<vmem>>, vector<32x32xbf16>
    %cst_19 = arith.constant dense<0.000000e+00> : vector<16x32xf32>
    %23 = tpu.matmul %21, %22, %cst_19 {dimension_numbers = #tpu.dot_dimension_numbers<[1], [0], [0], [1], [0, 0, 1, 1], [], []>} : vector<16x32xbf16>, vector<32x32xbf16>, vector<16x32xf32> -> vector<16x32xf32>
    %c64 = arith.constant 64 : index
    %c0_20 = arith.constant 0 : index
    %24 = vector.load %arg3[%c64, %c0_20] : memref<256x32xbf16, #tpu.memory_space<vmem>>, vector<32x32xbf16>
    %cst_21 = arith.constant dense<0.000000e+00> : vector<16x32xf32>
    %25 = tpu.matmul %21, %24, %cst_21 {dimension_numbers = #tpu.dot_dimension_numbers<[1], [0], [0], [1], [0, 0, 1, 1], [], []>} : vector<16x32xbf16>, vector<32x32xbf16>, vector<16x32xf32> -> vector<16x32xf32>
    %26 = arith.truncf %25 : vector<16x32xf32> to vector<16x32xbf16>
    %c0_22 = arith.constant 0 : index
    %c0_23 = arith.constant 0 : index
    %27 = vector.load %arg7[%c0_22, %c0_23] : memref<32x32xbf16, #tpu.memory_space<vmem>>, vector<16x32xbf16>
    tpu.vector_store %arg7[%c0_22, %c0_23], %26 {strides = array<i32>} : memref<32x32xbf16, #tpu.memory_space<vmem>>, vector<16x32xbf16>,
    %c96 = arith.constant 96 : index
    %c0_24 = arith.constant 0 : index
    %28 = vector.load %arg3[%c96, %c0_24] : memref<256x32xbf16, #tpu.memory_space<vmem>>, vector<32x32xbf16>
    %cst_25 = arith.constant dense<0.000000e+00> : vector<16x32xf32>
    %29 = tpu.matmul %21, %28, %cst_25 {dimension_numbers = #tpu.dot_dimension_numbers<[1], [0], [0], [1], [0, 0, 1, 1], [], []>} : vector<16x32xbf16>, vector<32x32xbf16>, vector<16x32xf32> -> vector<16x32xf32>
    %30 = arith.truncf %29 : vector<16x32xf32> to vector<16x32xbf16>
    %c16_26 = arith.constant 16 : index
    %c0_27 = arith.constant 0 : index
    %31 = vector.load %arg7[%c16_26, %c0_27] : memref<32x32xbf16, #tpu.memory_space<vmem>>, vector<16x32xbf16>
    tpu.vector_store %arg7[%c16_26, %c0_27], %30 {strides = array<i32>} : memref<32x32xbf16, #tpu.memory_space<vmem>>, vector<16x32xbf16>,
    %c0_28 = arith.constant 0 : index
    %c0_29 = arith.constant 0 : index
    %32 = vector.load %arg7[%c0_28, %c0_29] : memref<32x32xbf16, #tpu.memory_space<vmem>>, vector<32x32xbf16>
    %cst_30 = arith.constant dense<0.000000e+00> : vector<16x32xf32>
    %33 = tpu.matmul %0, %32, %cst_30 {dimension_numbers = #tpu.dot_dimension_numbers<[1], [0], [0], [1], [0, 0, 1, 1], [], []>} : vector<16x32xbf16>, vector<32x32xbf16>, vector<16x32xf32> -> vector<16x32xf32>
    %34 = arith.addf %23, %33 : vector<16x32xf32>
    %c1 = arith.constant 1 : index
    %c0_31 = arith.constant 0 : index
    %35 = vector.load %arg4[%c1, %c0_31] : memref<4x32xf32, #tpu.memory_space<vmem>>, vector<1x32xf32>
    %36 = vector.broadcast %35 : vector<1x32xf32> to vector<16x32xf32>
    %37 = arith.addf %34, %36 : vector<16x32xf32>
    %cst_32 = arith.constant 0.000000e+00 : f32
    %38 = vector.broadcast %cst_32 : f32 to vector<16x32xf32>
    %39 = arith.maximumf %37, %38 : vector<16x32xf32>
    %40 = arith.truncf %39 : vector<16x32xf32> to vector<16x32xbf16>
    %c192 = arith.constant 192 : index
    %c0_33 = arith.constant 0 : index
    %41 = vector.load %arg3[%c192, %c0_33] : memref<256x32xbf16, #tpu.memory_space<vmem>>, vector<32x32xbf16>
    %cst_34 = arith.constant dense<0.000000e+00> : vector<16x32xf32>
    %42 = tpu.matmul %40, %41, %cst_34 {dimension_numbers = #tpu.dot_dimension_numbers<[1], [0], [0], [1], [0, 0, 1, 1], [], []>} : vector<16x32xbf16>, vector<32x32xbf16>, vector<16x32xf32> -> vector<16x32xf32>
    %c2 = arith.constant 2 : index
    %c0_35 = arith.constant 0 : index
    %43 = vector.load %arg4[%c2, %c0_35] : memref<4x32xf32, #tpu.memory_space<vmem>>, vector<1x32xf32>
    %44 = vector.broadcast %43 : vector<1x32xf32> to vector<16x32xf32>
    %45 = arith.addf %42, %44 : vector<16x32xf32>
    %cst_36 = arith.constant 0.000000e+00 : f32
    %46 = vector.broadcast %cst_36 : f32 to vector<16x32xf32>
    %47 = arith.maximumf %45, %46 : vector<16x32xf32>
    %48 = arith.truncf %47 : vector<16x32xf32> to vector<16x32xbf16>
    %c224 = arith.constant 224 : index
    %c0_37 = arith.constant 0 : index
    %49 = vector.load %arg3[%c224, %c0_37] : memref<256x32xbf16, #tpu.memory_space<vmem>>, vector<32x32xbf16>
    %cst_38 = arith.constant dense<0.000000e+00> : vector<16x32xf32>
    %50 = tpu.matmul %48, %49, %cst_38 {dimension_numbers = #tpu.dot_dimension_numbers<[1], [0], [0], [1], [0, 0, 1, 1], [], []>} : vector<16x32xbf16>, vector<32x32xbf16>, vector<16x32xf32> -> vector<16x32xf32>
    %c3 = arith.constant 3 : index
    %c0_39 = arith.constant 0 : index
    %51 = vector.load %arg4[%c3, %c0_39] : memref<4x32xf32, #tpu.memory_space<vmem>>, vector<1x32xf32>
    %52 = vector.broadcast %51 : vector<1x32xf32> to vector<16x32xf32>
    %53 = arith.addf %50, %52 : vector<16x32xf32>
    %54 = vector.extract_strided_slice %53 {offsets = [0, 0], sizes = [16, 2], strides = [1, 1]} : vector<16x32xf32> to vector<16x2xf32>
    %55 = vector.extract_strided_slice %53 {offsets = [0, 2], sizes = [16, 2], strides = [1, 1]} : vector<16x32xf32> to vector<16x2xf32>
    %56 = arith.negf %54 : vector<16x2xf32>
    %57 = math.exp %56 : vector<16x2xf32>
    %cst_40 = arith.constant 1.000000e+00 : f32
    %58 = vector.broadcast %cst_40 : f32 to vector<16x2xf32>
    %59 = arith.addf %58, %57 : vector<16x2xf32>
    %60 = arith.divf %58, %59 : vector<16x2xf32>
    %61 = arith.mulf %54, %60 : vector<16x2xf32>
    %cst_41 = arith.constant 0.000000e+00 : f32
    %62 = vector.broadcast %cst_41 : f32 to vector<16x2xf32>
    %63 = arith.subf %62, %61 : vector<16x2xf32>
    %64 = math.exp %63 : vector<16x2xf32>
    %cst_42 = arith.constant 1.000000e+00 : f32
    %65 = vector.broadcast %cst_42 : f32 to vector<16x2xf32>
    %66 = arith.addf %65, %64 : vector<16x2xf32>
    %c0_43 = arith.constant 0 : index
    %c0_44 = arith.constant 0 : index
    %67 = vector.load %arg1[%c0_43, %c0_44] : memref<16x2xf32, #tpu.memory_space<vmem>>, vector<16x2xf32>
    %68 = arith.subf %67, %55 : vector<16x2xf32>
    %69 = arith.mulf %68, %66 : vector<16x2xf32>
    %c0_45 = arith.constant 0 : index
    %c0_46 = arith.constant 0 : index
    %70 = vector.load %arg5[%c0_45, %c0_46] : memref<16x2xf32, #tpu.memory_space<vmem>>, vector<16x2xf32>
    tpu.vector_store %arg5[%c0_45, %c0_46], %69 {strides = array<i32>} : memref<16x2xf32, #tpu.memory_space<vmem>>, vector<16x2xf32>,
    %71 = math.log %66 : vector<16x2xf32>
    %cst_47 = arith.constant dense<0.000000e+00> : vector<16xf32>
    %72 = vector.multi_reduction <add>, %71, %cst_47 [1] : vector<16x2xf32> to vector<16xf32>
    %73 = vector.shape_cast %72 : vector<16xf32> to vector<16x1xf32>
    %74 = vector.extract_strided_slice %73 {offsets = [0, 0], sizes = [8, 1], strides = [1, 1]} : vector<16x1xf32> to vector<8x1xf32>
    %75 = vector.shape_cast %74 : vector<8x1xf32> to vector<1x8x1xf32>
    %cst_48 = arith.constant dense<0.000000e+00> : vector<1xf32>
    %76 = vector.multi_reduction <add>, %75, %cst_48 [1, 2] : vector<1x8x1xf32> to vector<1xf32>
    %77 = vector.shape_cast %76 : vector<1xf32> to vector<1x1x1xf32>
    %78 = vector.extract %77[0, 0, 0] : f32 from vector<1x1x1xf32>
    %c0_49 = arith.constant 0 : index
    %79 = memref.load %arg6[%c0_49] : memref<2xf32, #tpu.memory_space<smem>>
    memref.store %78, %arg6[%c0_49] : memref<2xf32, #tpu.memory_space<smem>>
    %80 = vector.extract_strided_slice %73 {offsets = [8, 0], sizes = [8, 1], strides = [1, 1]} : vector<16x1xf32> to vector<8x1xf32>
    %81 = vector.shape_cast %80 : vector<8x1xf32> to vector<1x8x1xf32>
    %cst_50 = arith.constant dense<0.000000e+00> : vector<1xf32>
    %82 = vector.multi_reduction <add>, %81, %cst_50 [1, 2] : vector<1x8x1xf32> to vector<1xf32>
    %83 = vector.shape_cast %82 : vector<1xf32> to vector<1x1x1xf32>
    %84 = vector.extract %83[0, 0, 0] : f32 from vector<1x1x1xf32>
    %c1_51 = arith.constant 1 : index
    %85 = memref.load %arg6[%c1_51] : memref<2xf32, #tpu.memory_space<smem>>
    memref.store %84, %arg6[%c1_51] : memref<2xf32, #tpu.memory_space<smem>>
    return
  }
}

</mosaic_0001>

<llo_original>
// kernel: gaussianize_forward.1
$region0: #{gaussianize_forward.1}
  #allocation0 [shape = 'u32[]', space=smem, size = 0x4, offset = 0x4, fixed_abs, tag = 'smem constant byte address 0x4 - core index']
  #allocation1 [shape = 'u32[72,128]{1,0:T(1,128)}', space=vmem, size = 0x9000, scoped, tag = 'internal scratch']
  #allocation2 [shape = 'bf16[32,32]{1,0:T(8,128)(2,1)}', space=vmem, size = 0x2000, scoped, tag = 'scratch operand']
  %s0 = inlined_call_operand.vmem [shape: f32[16,4], index: 0, kind: input, shape index: {}]
  %s1 = inlined_call_operand.vmem [shape: f32[16,2], index: 1, kind: input, shape index: {}]
  %s2 = inlined_call_operand.vmem [shape: bf16[16,32], index: 2, kind: input, shape index: {}]
  %s3 = inlined_call_operand.vmem [shape: bf16[256,32], index: 3, kind: input, shape index: {}]
  %s4 = inlined_call_operand.vmem [shape: f32[4,32], index: 4, kind: input, shape index: {}]
  %s5 = inlined_call_operand.vmem [shape: f32[16,2], index: 5, kind: output, shape index: {0}]
  %s6 = inlined_call_operand.hbm [shape: f32[2], index: 6, kind: output, shape index: {1}]
  %7 = xla_tuple %s5, %s6
  %s8 = sld [smem:[#allocation0]]
  $region38: #{gaussianize_forward.1} parent=0
    _
  %s10 = ssub.s32 1, %s8
  %s11 = scalar_select 0, %s10, %s8
  $region1: #{gaussianize_forward.1} parent=0
    #allocation3 [shape = 'u8[512]{0}', space=smem, size = 0x200, scoped, tag = 'output window, operand 1, single buffered']
    #allocation4 [shape = 's32[1]{0}', space=sflag, size = 0x4, scoped, tag = 'scoped memory for gaussianize_forward.1']
    %12 = vsyncpa [#allocation4], 0
    // Predicated region
    $region2: #{gaussianize_forward.1} parent=1 // pred_check
      _
    $region3: #{gaussianize_forward.1} parent=1 // pred_check_branch
      %14 = sbr.rel (0) target = $region5
    $region4: #{gaussianize_forward.1} parent=1 // pred_region
      _
    $region5: #{gaussianize_forward.1} parent=1 // pred_fallthru
      _
    // Predicated region
    $region6: #{gaussianize_forward.1} parent=1 // pred_check
      _
    $region7: #{gaussianize_forward.1} parent=1 // pred_check_branch
      %16 = sbr.rel (0) target = $region9
    $region8: #{gaussianize_forward.1} parent=1 // pred_region
      _
    $region9: #{gaussianize_forward.1} parent=1 // pred_fallthru
      _
    // Predicated region
    $region10: #{gaussianize_forward.1} parent=1 // pred_check
      _
    $region11: #{gaussianize_forward.1} parent=1 // pred_check_branch
      %18 = sbr.rel (0) target = $region13
    $region12: #{gaussianize_forward.1} parent=1 // pred_region
      _
    $region13: #{gaussianize_forward.1} parent=1 // pred_fallthru
      _
    // Predicated region
    $region14: #{gaussianize_forward.1} parent=1 // pred_check
      _
    $region15: #{gaussianize_forward.1} parent=1 // pred_check_branch
      %20 = sbr.rel (0) target = $region17
    $region16: #{gaussianize_forward.1} parent=1 // pred_region
      _
    $region17: #{gaussianize_forward.1} parent=1 // pred_fallthru
      _
    // Predicated region
    $region18: #{gaussianize_forward.1} parent=1 // pred_check
      _
    $region19: #{gaussianize_forward.1} parent=1 // pred_check_branch
      %22 = sbr.rel (0) target = $region21
    $region20: #{gaussianize_forward.1} parent=1 // pred_region
      _
    $region21: #{gaussianize_forward.1} parent=1 // pred_fallthru
      _
    %v24 = vld [vmem:[%s2] sm:$0xf]
    %v25 = vld [vmem:[%s2 + $0x4] sm:$0xf]
    %v26 = vld [vmem:[%s0] sm:$0xff]
    %v27 = vld [vmem:[%s0 + $0x8] sm:$0xff]
    %v28 = vpack.c.bf16 %v27, %v26
    %v29 = vld [vmem:[%s3 + $0x40] sm:$0x3]
    %v30 = vld [vmem:[%s3] sm:$0x3]
    %vm31 = vcmask 31744
    %v33 = vsel %vm31, %v28, 0
    %vm35 = vcmask 1041408
    %v37 = vsel %vm35, %v30, 0
    %39 = vmatpush.bf16.msra.mxu0 0
    %40 = vmatpush.bf16.msra.mxu0 0
    %41 = vmatpush.bf16.msra.mxu0 0
    %42 = vmatpush.bf16.msra.mxu0 0
    %43 = vmatpush.bf16.msra.mxu0 0
    %44 = vmatpush.bf16.msra.mxu0 0
    %45 = vmatpush.bf16.msra.mxu0 0
    %46 = vmatpush.bf16.msra.mxu0 %v37
    %47 = vmatmul.bf16.gmra.mxu0 %v33
    %v48 = vpop.f32.mrf.mxu0
    %v49 = vadd.f32 0.0, %v48
    %v50 = vpop.f32.mrf.mxu0
    %v51 = vadd.f32 0.0, %v50
    %52 = vdwg.mxu0
    %v53 = vpack.c.bf16 %v49, %v49
    %v54 = vpack.c.bf16 %v51, %v51
    %vm55 = vcmask 257024
    %56 = vst.msk [vmem:[#allocation2] sm:$0xf] %vm55, %v53
    %57 = vst.msk [vmem:[#allocation2 + $0x4] sm:$0xf] %vm55, %v54
    %v58 = vld [vmem:[%s3 + $0x10] sm:$0x3]
    %v60 = vsel %vm35, %v58, 0
    %62 = vmatpush.bf16.msra.mxu0 0
    %63 = vmatpush.bf16.msra.mxu0 0
    %64 = vmatpush.bf16.msra.mxu0 0
    %65 = vmatpush.bf16.msra.mxu0 0
    %66 = vmatpush.bf16.msra.mxu0 0
    %67 = vmatpush.bf16.msra.mxu0 0
    %68 = vmatpush.bf16.msra.mxu0 0
    %69 = vmatpush.bf16.msra.mxu0 %v60
    %70 = vmatmul.bf16.gmra.mxu0 %v33
    %v71 = vpop.f32.mrf.mxu0
    %v72 = vadd.f32 0.0, %v71
    %v73 = vpop.f32.mrf.mxu0
    %v74 = vadd.f32 0.0, %v73
    %75 = vdwg.mxu0
    %v76 = vpack.c.bf16 %v72, %v72
    %v77 = vpack.c.bf16 %v74, %v74
    %78 = vst.msk [vmem:[#allocation2 + $0x8] sm:$0xf] %vm55, %v76
    %79 = vst.msk [vmem:[#allocation2 + $0xc] sm:$0xf] %vm55, %v77
    %v80 = vld [vmem:[#allocation2] sm:$0xf]
    %v81 = vld [vmem:[#allocation2 + $0x4] sm:$0xf]
    %v82 = vld [vmem:[#allocation2 + $0x8] sm:$0xf]
    %v83 = vld [vmem:[#allocation2 + $0xc] sm:$0xf]
    %v86 = vunpack.c.l.b16 %v24
    %v87 = vunpack.c.l.b16 %v25
    %v88 = vpack.c.b16 %v87, %v86
    %v93 = vunpack.c.l.b16 %v80
    %v94 = vunpack.c.l.b16 %v81
    %v95 = vunpack.c.l.b16 %v82
    %v96 = vunpack.c.l.b16 %v83
    %v97 = vpack.c.b16 %v94, %v93
    %v98 = vpack.c.b16 %v96, %v95
    %vm101 = vcmask 261120
    %v103 = vsel %vm101, %v88, 0
    %105 = vmatpush.bf16.msra.mxu0 0
    %106 = vmatpush.bf16.msra.mxu0 0
    %107 = vmatpush.bf16.msra.mxu0 0
    %108 = vmatpush.bf16.msra.mxu0 0
    %109 = vmatpush.bf16.msra.mxu0 0
    %110 = vmatpush.bf16.msra.mxu0 0
    %111 = vmatpush.bf16.msra.mxu0 %v98
    %112 = vmatpush.bf16.msra.mxu0 %v97
    %113 = vmatmul.bf16.gmra.mxu0 %v103
    %v114 = vpop.f32.mrf.mxu0
    %v115 = vadd.f32 0.0, %v114
    %v116 = vpop.f32.mrf.mxu0
    %v117 = vadd.f32 0.0, %v116
    %118 = vdwg.mxu0
    %v120 = vsel %vm35, %v29, 0
    %122 = vmatpush.bf16.msra.mxu0 0
    %123 = vmatpush.bf16.msra.mxu0 0
    %124 = vmatpush.bf16.msra.mxu0 0
    %125 = vmatpush.bf16.msra.mxu0 0
    %126 = vmatpush.bf16.msra.mxu0 0
    %127 = vmatpush.bf16.msra.mxu0 0
    %128 = vmatpush.bf16.msra.mxu0 0
    %129 = vmatpush.bf16.msra.mxu0 %v120
    %130 = vmatmul.bf16.gmra.mxu0 %v33
    %v131 = vpop.f32.mrf.mxu0
    %v132 = vadd.f32 %v115, %v131
    %v133 = vpop.f32.mrf.mxu0
    %v134 = vadd.f32 %v117, %v133
    %135 = vdwg.mxu0
    %v136 = vld [vmem:[%s4] sm:$0x1]
    %v137 = vperm.slane %v136, 0
    %v138 = vadd.f32 %v132, %v137
    %v139 = vadd.f32 %v134, %v137
    %v140 = vmax.f32 %v138, 0.0
    %v141 = vmax.f32 %v139, 0.0
    %v142 = vpack.c.bf16 %v141, %v140
    %v143 = vld [vmem:[%s3 + $0x50] sm:$0xf]
    %v144 = vld [vmem:[%s3 + $0x54] sm:$0xf]
    %v145 = vld [vmem:[%s3 + $0x58] sm:$0xf]
    %v146 = vld [vmem:[%s3 + $0x5c] sm:$0xf]
    %v147 = vld [vmem:[%s3 + $0x20] sm:$0xf]
    %v148 = vld [vmem:[%s3 + $0x24] sm:$0xf]
    %v149 = vld [vmem:[%s3 + $0x28] sm:$0xf]
    %v150 = vld [vmem:[%s3 + $0x2c] sm:$0xf]
    %v155 = vunpack.c.l.b16 %v147
    %v156 = vunpack.c.l.b16 %v148
    %v157 = vunpack.c.l.b16 %v149
    %v158 = vunpack.c.l.b16 %v150
    %v159 = vpack.c.b16 %v156, %v155
    %v160 = vpack.c.b16 %v158, %v157
    %v164 = vsel %vm101, %v142, 0
    %166 = vmatpush.bf16.msra.mxu0 0
    %167 = vmatpush.bf16.msra.mxu0 0
    %168 = vmatpush.bf16.msra.mxu0 0
    %169 = vmatpush.bf16.msra.mxu0 0
    %170 = vmatpush.bf16.msra.mxu0 0
    %171 = vmatpush.bf16.msra.mxu0 0
    %172 = vmatpush.bf16.msra.mxu0 %v160
    %173 = vmatpush.bf16.msra.mxu0 %v159
    %174 = vmatmul.bf16.gmra.mxu0 %v164
    %v175 = vpop.f32.mrf.mxu0
    %v176 = vadd.f32 0.0, %v175
    %v177 = vpop.f32.mrf.mxu0
    %v178 = vadd.f32 0.0, %v177
    %179 = vdwg.mxu0
    %v180 = vpack.c.bf16 %v176, %v176
    %v181 = vpack.c.bf16 %v178, %v178
    %182 = vst.msk [vmem:[#allocation2] sm:$0xf] %vm55, %v180
    %183 = vst.msk [vmem:[#allocation2 + $0x4] sm:$0xf] %vm55, %v181
    %v184 = vld [vmem:[%s3 + $0x30] sm:$0xf]
    %v185 = vld [vmem:[%s3 + $0x34] sm:$0xf]
    %v186 = vld [vmem:[%s3 + $0x38] sm:$0xf]
    %v187 = vld [vmem:[%s3 + $0x3c] sm:$0xf]
    %v192 = vunpack.c.l.b16 %v184
    %v193 = vunpack.c.l.b16 %v185
    %v194 = vunpack.c.l.b16 %v186
    %v195 = vunpack.c.l.b16 %v187
    %v196 = vpack.c.b16 %v193, %v192
    %v197 = vpack.c.b16 %v195, %v194
    %200 = vmatpush.bf16.msra.mxu0 0
    %201 = vmatpush.bf16.msra.mxu0 0
    %202 = vmatpush.bf16.msra.mxu0 0
    %203 = vmatpush.bf16.msra.mxu0 0
    %204 = vmatpush.bf16.msra.mxu0 0
    %205 = vmatpush.bf16.msra.mxu0 0
    %206 = vmatpush.bf16.msra.mxu0 %v197
    %207 = vmatpush.bf16.msra.mxu0 %v196
    %208 = vmatmul.bf16.gmra.mxu0 %v164
    %v209 = vpop.f32.mrf.mxu0
    %v210 = vadd.f32 0.0, %v209
    %v211 = vpop.f32.mrf.mxu0
    %v212 = vadd.f32 0.0, %v211
    %213 = vdwg.mxu0
    %v214 = vpack.c.bf16 %v210, %v210
    %v215 = vpack.c.bf16 %v212, %v212
    %216 = vst.msk [vmem:[#allocation2 + $0x8] sm:$0xf] %vm55, %v214
    %217 = vst.msk [vmem:[#allocation2 + $0xc] sm:$0xf] %vm55, %v215
    %v218 = vld [vmem:[#allocation2] sm:$0xf]
    %v219 = vld [vmem:[#allocation2 + $0x4] sm:$0xf]
    %v220 = vld [vmem:[#allocation2 + $0x8] sm:$0xf]
    %v221 = vld [vmem:[#allocation2 + $0xc] sm:$0xf]
    %v226 = vunpack.c.l.b16 %v218
    %v227 = vunpack.c.l.b16 %v219
    %v228 = vunpack.c.l.b16 %v220
    %v229 = vunpack.c.l.b16 %v221
    %v230 = vpack.c.b16 %v227, %v226
    %v231 = vpack.c.b16 %v229, %v228
    %234 = vmatpush.bf16.msra.mxu0 0
    %235 = vmatpush.bf16.msra.mxu0 0
    %236 = vmatpush.bf16.msra.mxu0 0
    %237 = vmatpush.bf16.msra.mxu0 0
    %238 = vmatpush.bf16.msra.mxu0 0
    %239 = vmatpush.bf16.msra.mxu0 0
    %240 = vmatpush.bf16.msra.mxu0 %v231
    %241 = vmatpush.bf16.msra.mxu0 %v230
    %242 = vmatmul.bf16.gmra.mxu0 %v103
    %v243 = vpop.f32.mrf.mxu0
    %v244 = vadd.f32 0.0, %v243
    %v245 = vpop.f32.mrf.mxu0
    %v246 = vadd.f32 0.0, %v245
    %247 = vdwg.mxu0
    %v252 = vunpack.c.l.b16 %v143
    %v253 = vunpack.c.l.b16 %v144
    %v254 = vunpack.c.l.b16 %v145
    %v255 = vunpack.c.l.b16 %v146
    %v256 = vpack.c.b16 %v253, %v252
    %v257 = vpack.c.b16 %v255, %v254
    %260 = vmatpush.bf16.msra.mxu0 0
    %261 = vmatpush.bf16.msra.mxu0 0
    %262 = vmatpush.bf16.msra.mxu0 0
    %263 = vmatpush.bf16.msra.mxu0 0
    %264 = vmatpush.bf16.msra.mxu0 0
    %265 = vmatpush.bf16.msra.mxu0 0
    %266 = vmatpush.bf16.msra.mxu0 %v257
    %267 = vmatpush.bf16.msra.mxu0 %v256
    %268 = vmatmul.bf16.gmra.mxu0 %v164
    %v269 = vpop.f32.mrf.mxu0
    %v270 = vadd.f32 %v244, %v269
    %v271 = vpop.f32.mrf.mxu0
    %v272 = vadd.f32 %v246, %v271
    %273 = vdwg.mxu0
    %v274 = vld [vmem:[%s4 + $0x1] sm:$0x1]
    %v275 = vperm.slane %v274, 0
    %v276 = vadd.f32 %v270, %v275
    %v277 = vadd.f32 %v272, %v275
    %v278 = vmax.f32 %v276, 0.0
    %v279 = vmax.f32 %v277, 0.0
    %v280 = vpack.c.bf16 %v279, %v278
    %v281 = vld [vmem:[%s3 + $0x60] sm:$0xf]
    %v282 = vld [vmem:[%s3 + $0x64] sm:$0xf]
    %v283 = vld [vmem:[%s3 + $0x68] sm:$0xf]
    %v284 = vld [vmem:[%s3 + $0x6c] sm:$0xf]
    %v285 = vld [vmem:[%s4 + $0x2] sm:$0x1]
    %v286 = vperm.slane %v285, 0
    %v291 = vunpack.c.l.b16 %v281
    %v292 = vunpack.c.l.b16 %v282
    %v293 = vunpack.c.l.b16 %v283
    %v294 = vunpack.c.l.b16 %v284
    %v295 = vpack.c.b16 %v292, %v291
    %v296 = vpack.c.b16 %v294, %v293
    %v300 = vsel %vm101, %v280, 0
    %302 = vmatpush.bf16.msra.mxu0 0
    %303 = vmatpush.bf16.msra.mxu0 0
    %304 = vmatpush.bf16.msra.mxu0 0
    %305 = vmatpush.bf16.msra.mxu0 0
    %306 = vmatpush.bf16.msra.mxu0 0
    %307 = vmatpush.bf16.msra.mxu0 0
    %308 = vmatpush.bf16.msra.mxu0 %v296
    %309 = vmatpush.bf16.msra.mxu0 %v295
    %310 = vmatmul.bf16.gmra.mxu0 %v300
    %v311 = vpop.f32.mrf.mxu0
    %v312 = vadd.f32 %v286, %v311
    %v313 = vpop.f32.mrf.mxu0
    %v314 = vadd.f32 %v286, %v313
    %315 = vdwg.mxu0
    %v316 = vmax.f32 %v312, 0.0
    %v317 = vmax.f32 %v314, 0.0
    %v318 = vpack.c.bf16 %v317, %v316
    %v319 = vld [vmem:[%s3 + $0x70] sm:$0xf]
    %v320 = vld [vmem:[%s3 + $0x74] sm:$0xf]
    %v321 = vld [vmem:[%s3 + $0x78] sm:$0xf]
    %v322 = vld [vmem:[%s3 + $0x7c] sm:$0xf]
    %v323 = vld [vmem:[%s4 + $0x3] sm:$0x1]
    %v324 = vperm.slane %v323, 0
    %v329 = vunpack.c.l.b16 %v319
    %v330 = vunpack.c.l.b16 %v320
    %v331 = vunpack.c.l.b16 %v321
    %v332 = vunpack.c.l.b16 %v322
    %v333 = vpack.c.b16 %v330, %v329
    %v334 = vpack.c.b16 %v332, %v331
    %v338 = vsel %vm101, %v318, 0
    %340 = vmatpush.bf16.msra.mxu0 0
    %341 = vmatpush.bf16.msra.mxu0 0
    %342 = vmatpush.bf16.msra.mxu0 0
    %343 = vmatpush.bf16.msra.mxu0 0
    %344 = vmatpush.bf16.msra.mxu0 0
    %345 = vmatpush.bf16.msra.mxu0 0
    %346 = vmatpush.bf16.msra.mxu0 %v334
    %347 = vmatpush.bf16.msra.mxu0 %v333
    %348 = vmatmul.bf16.gmra.mxu0 %v338
    %v349 = vpop.f32.mrf.mxu0
    %v350 = vadd.f32 %v324, %v349
    %v351 = vpop.f32.mrf.mxu0
    %v352 = vadd.f32 %v324, %v351
    %353 = vdwg.mxu0
    %v354 = vxor.u32 %v350, 2147483648
    %v355 = vxor.u32 %v352, 2147483648
    %v356 = vmul.f32 %v354, 1.442695
    %v357 = vpow.pop %v356
    %v358 = vmul.f32 %v355, 1.442695
    %v359 = vpow.pop %v358
    %v360 = vadd.f32 %v357, 1.0
    %v361 = vadd.f32 %v359, 1.0
    %v362 = vrcp.pop %v360
    %v363 = vmul.f32 %v360, %v362
    %v364 = vsub.f32 1.0, %v363
    %v365 = vmul.f32 %v362, %v364
    %v366 = vadd.f32 %v362, %v365
    %vm367 = vweird.f32 %v360
    %vm368 = vweird.f32 %v362
    %vm369 = vmor %vm367, %vm368
    %v370 = vsel %vm369, %v362, %v366
    %v371 = vand.u32 2147483647, %v360
    %vm372 = vcmp.eq.f32.partialorder %v371, 8.507059e+37
    %v373 = vand.u32 %v360, 2147483648
    %v374 = vor.u32 1.1754944e-38, %v373
    %v375 = vsel %vm372, %v374, %v370
    %v376 = vmul.f32 1.0, %v375
    %v377 = vrcp.pop %v361
    %v378 = vmul.f32 %v361, %v377
    %v379 = vsub.f32 1.0, %v378
    %v380 = vmul.f32 %v377, %v379
    %v381 = vadd.f32 %v377, %v380
    %vm382 = vweird.f32 %v361
    %vm383 = vweird.f32 %v377
    %vm384 = vmor %vm382, %vm383
    %v385 = vsel %vm384, %v377, %v381
    %v386 = vand.u32 2147483647, %v361
    %vm387 = vcmp.eq.f32.partialorder %v386, 8.507059e+37
    %v388 = vand.u32 %v361, 2147483648
    %v389 = vor.u32 1.1754944e-38, %v388
    %v390 = vsel %vm387, %v389, %v385
    %v391 = vmul.f32 1.0, %v390
    %v392 = vmul.f32 %v350, %v376
    %v393 = vmul.f32 %v352, %v391
    %v394 = vsub.f32 0.0, %v392
    %v395 = vsub.f32 0.0, %v393
    %v396 = vmul.f32 %v394, 1.442695
    %v397 = vpow.pop %v396
    %v398 = vmul.f32 %v395, 1.442695
    %v399 = vpow.pop %v398
    %v400 = vadd.f32 %v397, 1.0
    %v401 = vadd.f32 %v399, 1.0
    %v402 = vld [vmem:[%s1] sm:$0xff]
    %v403 = vld [vmem:[%s1 + $0x8] sm:$0xff]
    %406 = vrot.lane.b32.xlu0 %v350, 126
    %v407 = vpop.permute.xlu0 %406
    %408 = vrot.lane.b32.xlu0 %v352, 126
    %v409 = vpop.permute.xlu0 %408
    %v412 = vsub.f32 %v402, %v407
    %v413 = vsub.f32 %v403, %v409
    %v414 = vmul.f32 %v412, %v400
    %v415 = vmul.f32 %v413, %v401
    %vm416 = vcmask 15360
    %417 = vst.msk [vmem:[%s5] sm:$0xff] %vm416, %v414
    %418 = vst.msk [vmem:[%s5 + $0x8] sm:$0xff] %vm416, %v415
    %v419 = vlog2.pop %v400
    %v420 = vmul.f32 %v419, 0.6931472
    %v421 = vlog2.pop %v401
    %v422 = vmul.f32 %v421, 0.6931472
    %v423 = vsel %vm416, %v420, 0.0
    %424 = vadd.xlane.f32.xlu0 %v423
    %v425 = vpop.xlane.xlu0 %424
    %v426 = vsel %vm416, %v422, 0.0
    %427 = vadd.xlane.f32.xlu0 %v426
    %v428 = vpop.xlane.xlu0 %427
    %vm429 = vcmask 7168
    %v430 = vsel %vm429, %v425, 0.0
    %431 = vadd.xlane.f32.xlu0 %v430
    %v432 = vpop.xlane.xlu0 %431
    %v433 = vrot.slane %v432, 4
    %v434 = vadd.f32 %v432, %v433
    %v435 = vrot.slane %v434, 2
    %v436 = vadd.f32 %v434, %v435
    %v437 = vrot.slane %v436, 1
    %v438 = vadd.f32 %v436, %v437
    %s439 = vtos %v438
    %s440 = scalar_lea.smem [#allocation3], 0
    %441 = sst [smem:[%s440]] %s439
    %v442 = vsel %vm429, %v428, 0.0
    %443 = vadd.xlane.f32.xlu0 %v442
    %v444 = vpop.xlane.xlu0 %443
    %v445 = vrot.slane %v444, 4
    %v446 = vadd.f32 %v444, %v445
    %v447 = vrot.slane %v446, 2
    %v448 = vadd.f32 %v446, %v447
    %v449 = vrot.slane %v448, 1
    %v450 = vadd.f32 %v448, %v449
    %s451 = vtos %v450
    %s452 = scalar_lea.smem [#allocation3], 1
    %453 = sst [smem:[%s452]] %s451
    // Predicated region
    $region22: #{gaussianize_forward.1} parent=1 // pred_check
      _
    $region23: #{gaussianize_forward.1} parent=1 // pred_check_branch
      %455 = sbr.rel (0) target = $region25
    $region24: #{gaussianize_forward.1} parent=1 // pred_region
      _
    $region25: #{gaussianize_forward.1} parent=1 // pred_fallthru
      _
    // Predicated region
    $region26: #{gaussianize_forward.1} parent=1 // pred_check
      _
    $region27: #{gaussianize_forward.1} parent=1 // pred_check_branch
      %457 = sbr.rel (0) target = $region29
    $region28: #{gaussianize_forward.1} parent=1 // pred_region
      %459 = vsyncadd [#allocation4], 0
      %s461 = sshll.u32 %s6, 4
      %s462 = int_to_ptr.hbm [resolvable:$true] %s461
      %464 = dma.smem_to_hbm [#allocation3], 16, %s462, [#allocation4]
    $region29: #{gaussianize_forward.1} parent=1 // pred_fallthru
      _
    // Predicated region
    $region30: #{gaussianize_forward.1} parent=1 // pred_check
      _
    $region31: #{gaussianize_forward.1} parent=1 // pred_check_branch
      %466 = sbr.rel (0) target = $region33
    $region32: #{gaussianize_forward.1} parent=1 // pred_region
      _
    $region33: #{gaussianize_forward.1} parent=1 // pred_fallthru
      _
    // Predicated region
    $region34: #{gaussianize_forward.1} parent=1 // pred_check
      _
    $region35: #{gaussianize_forward.1} parent=1 // pred_check_branch
      %468 = sbr.rel (0) target = $region37
    $region36: #{gaussianize_forward.1} parent=1 // pred_region
      %470 = dma.done [#allocation4], 16
    $region37: #{gaussianize_forward.1} parent=1 // pred_fallthru
      _
    %471 = sfence
    %472 = vsyncpa [#allocation4], 1

</llo_original>
